<compile_context>
chip_gen: v7x
topology: tpu7x:2x2x1
jax: 0.10.0
libtpu: 0.0.40
codegen_flags: <defaults>
</compile_context>

<pallas_src>
import functools

import jax
import jax.numpy as jnp
from jax.experimental import pallas as pl
from jax.experimental.pallas import tpu as pltpu


def _round_up(x: int, m: int) -> int:
    return ((x + m - 1) // m) * m


def injector_block_kernel(x_ref, w_ref, ba_ref, o_ref):
    # x_ref : (TB, Cin)     batch tile
    # w_ref : (Cin, Cout)   weight, pre-transposed at init, VMEM-resident across grid
    # ba_ref: (2, Cout)     row 0 = bias, row 1 = PReLU slope (per-channel), resident
    # o_ref : (TB, Cout)    tight output tile (full-extent channel dim)
    y = jnp.dot(x_ref[...], w_ref[...], preferred_element_type=jnp.float32)
    bias = ba_ref[0:1, :]    # (1, Cout), broadcasts over batch rows
    slope = ba_ref[1:2, :]   # (1, Cout)
    y = y + bias
    o_ref[...] = jnp.where(y > 0.0, y, slope * y).astype(o_ref.dtype)


def prepare_injector_params(w, b, prelu_a):
    """One-time (init-time) parameter prep.

    w: (Cout, Cin) PyTorch nn.Linear weight  ->  returned as (Cin, Cout).
    b: (Cout,) bias.
    prelu_a: scalar (default PReLU) or (Cout,) per-channel slope.
    Returns (w_t, bias_slope) with bias_slope of shape (2, Cout).
    """
    out_channels, in_channels = w.shape
    w_t = jnp.asarray(w, jnp.float32).T  # (Cin, Cout), one-time transpose

    slope = jnp.asarray(prelu_a, jnp.float32).reshape(-1)
    assert slope.shape[0] in (1, out_channels), (
        "PReLU num_parameters must be 1 or out_channels")
    slope = jnp.broadcast_to(slope, (out_channels,))

    bias_slope = jnp.stack(
        [jnp.asarray(b, jnp.float32).reshape(out_channels), slope], axis=0)
    return w_t, bias_slope


@functools.partial(jax.jit, static_argnames=("max_rows",))
def injector_block_apply(x, w_t, bias_slope, *, max_rows=4096):
    """x: (B, Cin) f32.  w_t / bias_slope from prepare_injector_params."""
    batch, in_channels = x.shape
    assert w_t.shape[0] == in_channels
    out_channels = w_t.shape[1]

    # Batch tile: multiple of 8 sublanes; keep >=2 tiles when batch is big
    # enough (so the "parallel" axis can shard across v7x's 2 TCs), capped at
    # max_rows to amortize per-grid-step overhead while staying well under the
    # scoped-VMEM default on every generation at these channel counts.
    if batch > 16:
        tb = _round_up(pl.cdiv(batch, 2), 8)
    else:
        tb = _round_up(batch, 8)
    tb = min(max_rows, tb)

    grid = (pl.cdiv(batch, tb),)

    out = pl.pallas_call(
        injector_block_kernel,
        out_shape=jax.ShapeDtypeStruct((batch, out_channels), jnp.float32),
        grid=grid,
        in_specs=[
            # x: tiled over batch (ragged last tile handled by Pallas masking).
            pl.BlockSpec((tb, in_channels), lambda i: (i, 0)),
            # W (Cin, Cout): resident across the whole grid.
            pl.BlockSpec((in_channels, out_channels), lambda i: (0, 0)),
            # fused bias + PReLU slope: resident.
            pl.BlockSpec((2, out_channels), lambda i: (0, 0)),
        ],
        out_specs=pl.BlockSpec((tb, out_channels), lambda i: (i, 0)),
        compiler_params=pltpu.CompilerParams(
            dimension_semantics=("parallel",)),  # shards batch tiles across TCs
    )(x, w_t, bias_slope)

    return out


def _ref_forward(x, w, b, prelu_a):
    y = x @ w.T + b
    return jnp.where(y > 0.0, y, prelu_a * y)


if __name__ == "__main__":
    key = jax.random.PRNGKey(0)
    kx, kw, kb = jax.random.split(key, 3)

    in_channels, out_channels = 32, 64
    batch = 8

    # Deterministic synthetic parameters (shapes match nn.Linear(in, out) + nn.PReLU()).
    bound = 1.0 / (in_channels ** 0.5)
    w = jax.random.uniform(kw, (out_channels, in_channels), jnp.float32, -bound, bound)
    b = jax.random.uniform(kb, (out_channels,), jnp.float32, -bound, bound)
    prelu_a = jnp.float32(0.25)  # PyTorch PReLU default init (single parameter)

    x = jax.random.normal(kx, (batch, in_channels), jnp.float32)

    # One-time parameter prep (would live at model-init time in a real deployment).
    w_t, bias_slope = prepare_injector_params(w, b, prelu_a)

    out = injector_block_apply(x, w_t, bias_slope)
    out = jax.block_until_ready(out)

    ref = _ref_forward(x, w, b, prelu_a)
    assert out.shape == (batch, out_channels)
    assert jnp.allclose(out, ref, atol=1e-5, rtol=1e-5)

    print("KERNEL_OK")
</pallas_src>

<mosaic_0001>
module attributes {stable_mosaic.version = 11 : i64} {
  func.func @injector_block_kernel(%arg0: i32, %arg1: memref<8x32xf32, #tpu.memory_space<vmem>>, %arg2: memref<32x64xf32, #tpu.memory_space<vmem>>, %arg3: memref<2x64xf32, #tpu.memory_space<vmem>>, %arg4: memref<8x64xf32, #tpu.memory_space<vmem>>) attributes {dimension_semantics = [#tpu.dimension_semantics<parallel>], iteration_bounds = array<i64: 1>, scalar_prefetch = 0 : i64, scratch_operands = 0 : i64, tpu.core_type = #tpu.core_type<tc>, window_params = [{transform_indices = @transform_0, window_bounds = array<i64: 8, 32>}, {pipeline_mode = #tpu.pipeline_mode<synchronous>, transform_indices = @transform_1, window_bounds = array<i64: 32, 64>}, {pipeline_mode = #tpu.pipeline_mode<synchronous>, transform_indices = @transform_2, window_bounds = array<i64: 2, 64>}, {transform_indices = @transform_3, window_bounds = array<i64: 8, 64>}]} {
    %c0 = arith.constant 0 : index
    %c0_0 = arith.constant 0 : index
    %0 = vector.load %arg1[%c0, %c0_0] : memref<8x32xf32, #tpu.memory_space<vmem>>, vector<8x32xf32>
    %c0_1 = arith.constant 0 : index
    %c0_2 = arith.constant 0 : index
    %1 = vector.load %arg2[%c0_1, %c0_2] : memref<32x64xf32, #tpu.memory_space<vmem>>, vector<32x64xf32>
    %cst = arith.constant dense<0.000000e+00> : vector<8x64xf32>
    %2 = tpu.matmul %0, %1, %cst {dimension_numbers = #tpu.dot_dimension_numbers<[1], [0], [0], [1], [0, 0, 1, 1], [], []>} : vector<8x32xf32>, vector<32x64xf32>, vector<8x64xf32> -> vector<8x64xf32>
    %c0_3 = arith.constant 0 : index
    %c0_4 = arith.constant 0 : index
    %3 = vector.load %arg3[%c0_3, %c0_4] : memref<2x64xf32, #tpu.memory_space<vmem>>, vector<1x64xf32>
    %c1 = arith.constant 1 : index
    %c0_5 = arith.constant 0 : index
    %4 = vector.load %arg3[%c1, %c0_5] : memref<2x64xf32, #tpu.memory_space<vmem>>, vector<1x64xf32>
    %5 = vector.broadcast %3 : vector<1x64xf32> to vector<8x64xf32>
    %6 = arith.addf %2, %5 : vector<8x64xf32>
    %cst_6 = arith.constant 0.000000e+00 : f32
    %7 = vector.broadcast %cst_6 : f32 to vector<8x64xf32>
    %8 = arith.cmpf ogt, %6, %7 : vector<8x64xf32>
    %9 = vector.broadcast %4 : vector<1x64xf32> to vector<8x64xf32>
    %10 = arith.mulf %9, %6 : vector<8x64xf32>
    %11 = arith.select %8, %6, %10 : vector<8x64xi1>, vector<8x64xf32>
    %c0_7 = arith.constant 0 : index
    %c0_8 = arith.constant 0 : index
    %12 = vector.load %arg4[%c0_7, %c0_8] : memref<8x64xf32, #tpu.memory_space<vmem>>, vector<8x64xf32>
    tpu.vector_store %arg4[%c0_7, %c0_8], %11 {strides = array<i32>} : memref<8x64xf32, #tpu.memory_space<vmem>>, vector<8x64xf32>,
    return
  }
  func.func @transform_0(%arg0: i32) -> (i32, i32) {
    %c0_i32 = arith.constant 0 : i32
    %c0_i32_0 = arith.constant 0 : i32
    return %arg0, %c0_i32 : i32, i32
  }
  func.func @transform_1(%arg0: i32) -> (i32, i32) {
    %c0_i32 = arith.constant 0 : i32
    %c0_i32_0 = arith.constant 0 : i32
    %c0_i32_1 = arith.constant 0 : i32
    return %c0_i32, %c0_i32_0 : i32, i32
  }
  func.func @transform_2(%arg0: i32) -> (i32, i32) {
    %c0_i32 = arith.constant 0 : i32
    %c0_i32_0 = arith.constant 0 : i32
    %c0_i32_1 = arith.constant 0 : i32
    return %c0_i32, %c0_i32_0 : i32, i32
  }
  func.func @transform_3(%arg0: i32) -> (i32, i32) {
    %c0_i32 = arith.constant 0 : i32
    %c0_i32_0 = arith.constant 0 : i32
    return %arg0, %c0_i32 : i32, i32
  }
}

</mosaic_0001>

<llo_original>
// kernel: injector_block_apply.1
$region0: #{injector_block_apply.1}
  #allocation0 [shape = 'u32[]', space=smem, size = 0x4, offset = 0x4, fixed_abs, tag = 'smem constant byte address 0x4 - core index']
  #allocation1 [shape = 'u32[144,128]{1,0:T(1,128)}', space=vmem, size = 0x12000, scoped, tag = 'internal scratch']
  %s0 = inlined_call_operand.hbm [shape: f32[8,32], index: 0, kind: input, shape index: {}]
  %s1 = inlined_call_operand.hbm [shape: f32[32,64], index: 1, kind: input, shape index: {}]
  %s2 = inlined_call_operand.vmem [shape: f32[2,64], index: 2, kind: input, shape index: {}]
  %s3 = inlined_call_operand.hbm [shape: f32[8,64], index: 3, kind: output, shape index: {}]
  %s4 = sld [smem:[#allocation0]]
  $region30: #{injector_block_apply.1} parent=0
    _
  %s6 = ssub.s32 1, %s4
  %s7 = scalar_select 0, %s6, %s4
  $region1: #{injector_block_apply.1} parent=0
    #allocation2 [shape = 'u8[4096]{0}', space=vmem, size = 0x1000, scoped, tag = 'input window, operand 0, single buffered']
    #allocation3 [shape = 's32[1]{0}', space=sflag, size = 0x4, scoped, tag = 'scoped memory for injector_block_apply.1']
    #allocation4 [shape = 's32[1]{0}', space=sflag, size = 0x4, scoped, tag = 'scoped memory for injector_block_apply.1']
    #allocation5 [shape = 'u8[16384]{0}', space=vmem, size = 0x4000, scoped, tag = 'input window, operand 1, single buffered']
    #allocation6 [shape = 's32[1]{0}', space=sflag, size = 0x4, scoped, tag = 'scoped memory for injector_block_apply.1']
    #allocation7 [shape = 'u8[4096]{0}', space=vmem, size = 0x1000, scoped, tag = 'output window, operand 0, single buffered']
    %8 = vsyncpa [#allocation3], 0
    %9 = vsyncpa [#allocation6], 0
    %10 = vsyncpa [#allocation4], 0
    // Predicated region
    $region2: #{injector_block_apply.1} parent=1 // pred_check
      _
    $region3: #{injector_block_apply.1} parent=1 // pred_check_branch
      %12 = sbr.rel (0) target = $region5
    $region4: #{injector_block_apply.1} parent=1 // pred_region
      %s14 = ssub.s32 128, 128
      %15 = vsyncadd [#allocation3], %s14
      %s17 = sshll.u32 [#allocation2], 4
      %s18 = int_to_ptr.vmem [resolvable:$true] %s17
      %20 = dma.hbm_to_vmem [thread:$0]  %s0, 128, %s18, [#allocation3]
    $region5: #{injector_block_apply.1} parent=1 // pred_fallthru
      _
    // Predicated region
    $region6: #{injector_block_apply.1} parent=1 // pred_check
      _
    $region7: #{injector_block_apply.1} parent=1 // pred_check_branch
      %22 = sbr.rel (0) target = $region9
    $region8: #{injector_block_apply.1} parent=1 // pred_region
      %s24 = ssub.s32 512, 512
      %25 = vsyncadd [#allocation6], %s24
      %s26 = sshll.u32 [#allocation5], 4
      %s27 = int_to_ptr.vmem [resolvable:$true] %s26
      %32 = dma.hbm_to_vmem [thread:$0]  %s1, 512, %s27, [#allocation6], 128, 128, 8
    $region9: #{injector_block_apply.1} parent=1 // pred_fallthru
      _
    // Predicated region
    $region10: #{injector_block_apply.1} parent=1 // pred_check
      _
    $region11: #{injector_block_apply.1} parent=1 // pred_check_branch
      %34 = sbr.rel (0) target = $region13
    $region12: #{injector_block_apply.1} parent=1 // pred_region
      _
    $region13: #{injector_block_apply.1} parent=1 // pred_fallthru
      _
    // Predicated region
    $region14: #{injector_block_apply.1} parent=1 // pred_check
      _
    $region15: #{injector_block_apply.1} parent=1 // pred_check_branch
      %36 = sbr.rel (0) target = $region17
    $region16: #{injector_block_apply.1} parent=1 // pred_region
      %37 = dma.done [#allocation3], 128
    $region17: #{injector_block_apply.1} parent=1 // pred_fallthru
      _
    // Predicated region
    $region18: #{injector_block_apply.1} parent=1 // pred_check
      _
    $region19: #{injector_block_apply.1} parent=1 // pred_check_branch
      %39 = sbr.rel (0) target = $region21
    $region20: #{injector_block_apply.1} parent=1 // pred_region
      %40 = dma.done [#allocation6], 512
    $region21: #{injector_block_apply.1} parent=1 // pred_fallthru
      _
    %v41 = vld [vmem:[#allocation2] sm:$0xff]
    %v42 = vld [vmem:[#allocation5] sm:$0xff]
    %v43 = vld [vmem:[#allocation5 + $0x8] sm:$0xff]
    %v44 = vld [vmem:[#allocation5 + $0x10] sm:$0xff]
    %v45 = vld [vmem:[#allocation5 + $0x18] sm:$0xff]
    %v46 = vld [vmem:[%s2] sm:$0x1]
    %v47 = vld [vmem:[%s2 + $0x1] sm:$0x1]
    %v48 = vlaneseq
    %v49 = vshrl.u32 %v48, 7
    %v50 = vsub.s32 0, %v49
    %v51 = vrot.slane %v46, %v50
    %vm52 = vcmask 261120
    %v54 = vsel %vm52, %v41, 0
    %56 = vmatprep.subr.mxu0 0.0
    %57 = vmatpush1.msra.mxu0 %v42
    %58 = vmatprep.subr.mxu0 0.0
    %59 = vmatpush1.msra.mxu0 %v43
    %60 = vmatprep.subr.mxu0 0.0
    %61 = vmatpush1.msra.mxu0 %v44
    %62 = vmatprep.subr.mxu0 0.0
    %63 = vmatpush1.msra.mxu0 %v45
    %64 = vmatprep.subr.mxu0 0.0
    %65 = vmatpush1.msra.mxu0 0.0
    %66 = vmatprep.subr.mxu0 0.0
    %67 = vmatpush1.msra.mxu0 0.0
    %68 = vmatprep.subr.mxu0 0.0
    %69 = vmatpush1.msra.mxu0 0.0
    %70 = vmatprep.subr.mxu0 0.0
    %71 = vmatpush1.msra.mxu0 0.0
    %72 = vmatprep.subr.mxu0 0.0
    %73 = vmatpush1.msra.mxu0 0.0
    %74 = vmatprep.subr.mxu0 0.0
    %75 = vmatpush1.msra.mxu0 0.0
    %76 = vmatprep.subr.mxu0 0.0
    %77 = vmatpush1.msra.mxu0 0.0
    %78 = vmatprep.subr.mxu0 0.0
    %79 = vmatpush1.msra.mxu0 0.0
    %80 = vmatprep.subr.mxu0 0.0
    %81 = vmatpush1.msra.mxu0 0.0
    %82 = vmatprep.subr.mxu0 0.0
    %83 = vmatpush1.msra.mxu0 0.0
    %84 = vmatprep.subr.mxu0 0.0
    %85 = vmatpush1.msra.mxu0 0.0
    %86 = vmatprep.subr.mxu0 0.0
    %87 = vmatpush1.msra.mxu0 0.0
    %88 = vmatprep.subr.mxu0 0.0
    %89 = vmatpush1.msra.mxu0 0.0
    %90 = vmatprep.subr.mxu0 0.0
    %91 = vmatpush1.msra.mxu0 0.0
    %92 = vmatprep.subr.mxu0 0.0
    %93 = vmatpush1.msra.mxu0 0.0
    %94 = vmatprep.subr.mxu0 0.0
    %95 = vmatpush1.msra.mxu0 0.0
    %96 = vmatprep.subr.mxu0 0.0
    %97 = vmatpush1.msra.mxu0 0.0
    %98 = vmatprep.subr.mxu0 0.0
    %99 = vmatpush1.msra.mxu0 0.0
    %100 = vmatprep.subr.mxu0 0.0
    %101 = vmatpush1.msra.mxu0 0.0
    %102 = vmatprep.subr.mxu0 0.0
    %103 = vmatpush1.msra.mxu0 0.0
    %104 = vmatprep.subr.mxu0 0.0
    %105 = vmatpush1.msra.mxu0 0.0
    %106 = vmatprep.subr.mxu0 0.0
    %107 = vmatpush1.msra.mxu0 0.0
    %108 = vmatprep.subr.mxu0 0.0
    %109 = vmatpush1.msra.mxu0 0.0
    %110 = vmatprep.subr.mxu0 0.0
    %111 = vmatpush1.msra.mxu0 0.0
    %112 = vmatprep.subr.mxu0 0.0
    %113 = vmatpush1.msra.mxu0 0.0
    %114 = vmatprep.subr.mxu0 0.0
    %115 = vmatpush1.msra.mxu0 0.0
    %116 = vmatprep.subr.mxu0 0.0
    %117 = vmatpush1.msra.mxu0 0.0
    %118 = vmatprep.subr.mxu0 0.0
    %119 = vmatpush1.msra.mxu0 0.0
    %120 = vmatprep.mubr.f32.mxu0 0.0
    %121 = vmatmul.mubr.f32.gmra.mrb[0].mxu0 %v54
    %v122 = vpop.f32.mrb[0].mxu0
    %v123 = vadd.f32 %v51, %v122
    %v124 = vpop.f32.mrb[0].mxu0
    %125 = vdwg.mxu0
    %vm126 = vcmp.gt.f32.partialorder %v123, 0.0
    %v127 = vlaneseq
    %v128 = vshrl.u32 %v127, 7
    %v129 = vsub.s32 0, %v128
    %v130 = vrot.slane %v47, %v129
    %v131 = vmul.f32 %v130, %v123
    %v132 = vsel %vm126, %v123, %v131
    %vm133 = vcmask 523264
    %134 = vst.msk [vmem:[#allocation7] sm:$0xff] %vm133, %v132
    // Predicated region
    $region22: #{injector_block_apply.1} parent=1 // pred_check
      _
    $region23: #{injector_block_apply.1} parent=1 // pred_check_branch
      %136 = sbr.rel (0) target = $region25
    $region24: #{injector_block_apply.1} parent=1 // pred_region
      %s138 = ssub.s32 128, 128
      %139 = vsyncadd [#allocation4], %s138
      %s141 = sshll.u32 [#allocation7], 4
      %s142 = int_to_ptr.vmem [resolvable:$true] %s141
      %144 = dma.vmem_to_hbm [thread:$0]  %s142, 128, %s3, [#allocation4]
    $region25: #{injector_block_apply.1} parent=1 // pred_fallthru
      _
    // Predicated region
    $region26: #{injector_block_apply.1} parent=1 // pred_check
      _
    $region27: #{injector_block_apply.1} parent=1 // pred_check_branch
      %146 = sbr.rel (0) target = $region29
    $region28: #{injector_block_apply.1} parent=1 // pred_region
      %147 = dma.done [#allocation4], 128
    $region29: #{injector_block_apply.1} parent=1 // pred_fallthru
      _
    %148 = vsyncpa [#allocation3], 1
    %149 = vsyncpa [#allocation6], 1
    %150 = vsyncpa [#allocation4], 1

</llo_original>
